<compile_context>
chip_gen: v7x
topology: tpu7x:2x2x1
jax: 0.10.0
libtpu: 0.0.40
codegen_flags: <defaults>
</compile_context>

<pallas_src>
import functools

import jax
import jax.numpy as jnp
from jax.experimental import pallas as pl
from jax.experimental.pallas import tpu as pltpu


def _global_sum_pool_kernel(x_ref, w_ref, b_ref, o_ref, acc_ref, *,
                            wh_total, wh_tile, mask_tail):
    # x_ref:   (TB, C, WH_TILE) native-NCHW block, spatial dense on lane axis
    # w_ref:   (C, Cp)          folded weight  Wh @ Wc
    # b_ref:   (1, Cp)          folded bias    WH*(bh @ Wc) + bc
    # o_ref:   (TB, Cp)
    # acc_ref: (TB, C) f32      spatial-sum accumulator (VMEM scratch)
    k = pl.program_id(1)
    nk = pl.num_programs(1)

    @pl.when(k == 0)
    def _():
        acc_ref[...] = jnp.zeros_like(acc_ref)

    x = x_ref[...].astype(jnp.float32)                           # (TB, C, WH_T)
    if mask_tail:
        # Ragged last WH tile: zero lanes past the true spatial extent so they
        # don't pollute the accumulator.
        remaining = wh_total - k * wh_tile
        lane = jax.lax.broadcasted_iota(jnp.int32, x.shape, 2)
        x = jnp.where(lane < remaining, x, 0.0)
    acc_ref[...] += jnp.sum(x, axis=-1)                          # (TB, C)

    @pl.when(k == nk - 1)
    def _():
        out = jnp.dot(acc_ref[...], w_ref[...],
                      preferred_element_type=jnp.float32)
        o_ref[...] = (out + b_ref[...]).astype(o_ref.dtype)


def _tpu_config():
    """Return (scoped VMEM budget bytes, multi-TensorCore?) for this chip."""
    vmem_physical = 64 * 1024 * 1024            # conservative fallback (v7x/TC)
    try:
        vmem_physical = int(pltpu.get_tpu_info().vmem_capacity_bytes)
    except Exception:
        pass
    kind = ""
    try:
        kind = str(jax.devices()[0].device_kind).lower()
    except Exception:
        pass
    # v7x: 2 TensorCores share "parallel" grid axes; VMEM is 64 MiB per TC.
    multi_tc = ("v7" in kind) or ("7x" in kind) or (
        vmem_physical <= 64 * 1024 * 1024)
    # Scoped budget: half of physical (~64 MiB v5e/v6e, ~32 MiB v7x).
    vmem_limit = max(16 * 1024 * 1024, vmem_physical // 2)
    if multi_tc:
        vmem_limit = min(vmem_limit, 32 * 1024 * 1024)
    return vmem_limit, multi_tc


def _choose_batch_tile(N, cap_tb, multi_tc):
    """Largest legal batch tile (multiple of 8, or the whole batch) <= cap."""
    cap = max(1, min(int(cap_tb), N))
    if N <= 8:
        return N                                   # TB == N: full-dim block, legal layout
    tiles = list(range(8, (cap // 8) * 8 + 1, 8))  # multiples of 8 that fit
    if not tiles:
        return N if cap >= N else 8
    if not multi_tc:
        # Single TensorCore (v5e/v6e): biggest block wins; 1 grid step is fine.
        return N if cap >= N else tiles[-1]
    # v7x: prefer an even number (>= 2) of batch steps so both TCs stay busy.
    even = [t for t in tiles if pl.cdiv(N, t) >= 2 and pl.cdiv(N, t) % 2 == 0]
    if even:
        return even[-1]
    multi = [t for t in tiles if pl.cdiv(N, t) >= 2]
    if multi:
        return multi[-1]
    return N if cap >= N else tiles[-1]


def _pick_tiles(N, C, WH, itemsize, vmem_limit, multi_tc):
    """Pick (TB, WH_TILE) so double-buffered x + weights + output fit VMEM."""
    fixed = 2 * 1024 * 1024                   # weights, bias, output, acc, slack
    budget_x = max(256 * 1024, int(vmem_limit * 0.85) - fixed)

    tb_min = N if N < 8 else 8
    per_row = C * WH * itemsize * 2           # one batch row, double-buffered

    if tb_min * per_row <= budget_x:
        # Full spatial extent per block; spend the rest of the budget on batch.
        wh_tile = WH
        tb = _choose_batch_tile(N, budget_x // per_row, multi_tc)
    else:
        # Spatial tiling (accumulator path): minimal legal batch tile, largest
        # lane-aligned (multiple-of-128) spatial tile that fits the budget.
        tb = tb_min
        per_elem = tb * C * itemsize * 2
        cap_wh = max(1, budget_x // per_elem)
        if WH <= 128 or cap_wh >= WH:
            wh_tile = WH
        else:
            wh_tile = max(128, (min(cap_wh, WH) // 128) * 128)
        # TODO(synk): if C alone is so large that a (TB, C, 128) block exceeds
        # the budget, add a third grid axis tiling C as well.
    return int(tb), int(wh_tile)


def global_sum_pool(x_nchw, wh, bh, wc, bc):
    """GlobalSumPool forward.

    x_nchw: (N, C, W, H); wh: (C, D) (= torch h.weight.T); bh: (D,);
    wc: (D, Cp) (= torch c.weight.T); bc: (Cp,).
    """
    N, C, W, H = x_nchw.shape
    Cp = wc.shape[1]
    WH = W * H

    # Pure reshape (no permute): (N, C, W, H) -> (N, C, WH); WH sits dense on
    # the 128-lane axis so the spatial sum is a cheap lane reduce.
    x = x_nchw.reshape(N, C, WH)

    # Fold both Linears (sum commutes with the affine maps):
    #   sum_WH(U @ Wh + bh) @ Wc + bc == sum_WH(U) @ (Wh@Wc) + WH*(bh@Wc) + bc
    wc_f = wc.astype(jnp.float32)
    w_fold = wh.astype(jnp.float32) @ wc_f                        # (C, Cp)
    b_fold = (float(WH) * (bh.astype(jnp.float32) @ wc_f)
              + bc.astype(jnp.float32)).reshape(1, Cp)            # (1, Cp)

    vmem_limit, multi_tc = _tpu_config()
    TB, WH_TILE = _pick_tiles(N, C, WH, x.dtype.itemsize, vmem_limit, multi_tc)
    nb = pl.cdiv(N, TB)
    nk = pl.cdiv(WH, WH_TILE)
    mask_tail = (WH % WH_TILE) != 0

    # Deepen the input pipeline when blocks are tiny (DMA-issue-latency bound).
    x_block = (TB, C, WH_TILE)
    x_imap = lambda n, k: (n, 0, k)
    x_block_bytes = TB * C * WH_TILE * x.dtype.itemsize
    if x_block_bytes < (1 << 20) and nb * nk > 2:
        try:
            x_spec = pl.BlockSpec(x_block, x_imap, pipeline_mode=pl.Buffered(3))
        except TypeError:   # older Pallas without pipeline_mode kwarg
            x_spec = pl.BlockSpec(x_block, x_imap)
    else:
        x_spec = pl.BlockSpec(x_block, x_imap)

    grid_spec = pltpu.PrefetchScalarGridSpec(
        num_scalar_prefetch=0,
        grid=(nb, nk),                      # batch "parallel", WH reduction last
        in_specs=[
            x_spec,                                           # x block
            pl.BlockSpec((C, Cp), lambda n, k: (0, 0)),       # folded weight
            pl.BlockSpec((1, Cp), lambda n, k: (0, 0)),       # folded bias
        ],
        out_specs=pl.BlockSpec((TB, Cp), lambda n, k: (n, 0)),
        scratch_shapes=[pltpu.VMEM((TB, C), jnp.float32)],
    )

    kernel = functools.partial(_global_sum_pool_kernel,
                               wh_total=WH, wh_tile=WH_TILE, mask_tail=mask_tail)

    out_dtype = x_nchw.dtype
    cost = pl.CostEstimate(
        flops=N * C * WH + 2 * N * C * Cp,
        transcendentals=0,
        bytes_accessed=(N * C * WH * x.dtype.itemsize
                        + N * Cp * jnp.dtype(out_dtype).itemsize
                        + (C * Cp + Cp) * 4),
    )

    return pl.pallas_call(
        kernel,
        out_shape=jax.ShapeDtypeStruct((N, Cp), out_dtype),
        grid_spec=grid_spec,
        compiler_params=pltpu.CompilerParams(
            dimension_semantics=("parallel", "arbitrary"),
            vmem_limit_bytes=int(vmem_limit),
        ),
        cost_estimate=cost,
    )(x, w_fold, b_fold)


if __name__ == "__main__":
    # Small deterministic setup: N=2, C=4, W=H=16, hidden D=32, output C'=8
    N, C, W, H = 2, 4, 16, 16
    D, Cp = 32, 8

    key = jax.random.PRNGKey(0)
    kx, kwh, kbh, kwc, kbc = jax.random.split(key, 5)

    x = jax.random.normal(kx, (N, C, W, H), dtype=jnp.float32)

    # Deterministic "NormalInit"-style params for the two Linear layers.
    # torch Linear weight is (out, in); we store the transposed (in, out) form.
    wh = jax.random.normal(kwh, (C, D), dtype=jnp.float32) * 0.1   # h: C -> D
    bh = jax.random.normal(kbh, (D,), dtype=jnp.float32) * 0.1
    wc = jax.random.normal(kwc, (D, Cp), dtype=jnp.float32) * 0.1  # c: D -> C'
    bc = jax.random.normal(kbc, (Cp,), dtype=jnp.float32) * 0.1

    out = global_sum_pool(x, wh, bh, wc, bc)
    out = jax.block_until_ready(out)

    # Pure-JAX reference matching the PyTorch forward exactly (unfolded order).
    u_ref = jnp.transpose(x, (0, 2, 3, 1)).reshape(N, W * H, C)
    v_ref = u_ref @ wh + bh
    ref = v_ref.sum(axis=1) @ wc + bc
    assert out.shape == (N, Cp)
    assert jnp.allclose(out, ref, atol=1e-4, rtol=1e-4)

    print("KERNEL_OK")
</pallas_src>

<mosaic_0001>
module attributes {stable_mosaic.version = 11 : i64} {
  func.func @_global_sum_pool_kernel(%arg0: i32, %arg1: i32, %arg2: memref<2x4x256xf32, #tpu.memory_space<vmem>>, %arg3: memref<4x8xf32, #tpu.memory_space<vmem>>, %arg4: memref<1x8xf32, #tpu.memory_space<vmem>>, %arg5: memref<2x8xf32, #tpu.memory_space<vmem>>, %arg6: memref<2x4xf32, #tpu.memory_space<vmem>>) attributes {dimension_semantics = [#tpu.dimension_semantics<parallel>, #tpu.dimension_semantics<arbitrary>], iteration_bounds = array<i64: 1, 1>, scalar_prefetch = 0 : i64, scratch_operands = 1 : i64, tpu.core_type = #tpu.core_type<tc>, window_params = [{transform_indices = @transform_0, window_bounds = array<i64: 2, 4, 256>}, {pipeline_mode = #tpu.pipeline_mode<synchronous>, transform_indices = @transform_1, window_bounds = array<i64: 4, 8>}, {pipeline_mode = #tpu.pipeline_mode<synchronous>, transform_indices = @transform_2, window_bounds = array<i64: 1, 8>}, {transform_indices = @transform_3, window_bounds = array<i64: 2, 8>}]} {
    %c0_i32 = arith.constant 0 : i32
    %0 = arith.cmpi eq, %arg1, %c0_i32 : i32
    %1 = arith.extui %0 : i1 to i32
    %c0_i32_0 = arith.constant 0 : i32
    %2 = arith.cmpi ne, %1, %c0_i32_0 : i32
    scf.if %2 {
      %cst_9 = arith.constant 0.000000e+00 : f32
      %11 = vector.broadcast %cst_9 : f32 to vector<2x4xf32>
      %c0_10 = arith.constant 0 : index
      %c0_11 = arith.constant 0 : index
      %12 = vector.load %arg6[%c0_10, %c0_11] : memref<2x4xf32, #tpu.memory_space<vmem>>, vector<2x4xf32>
      tpu.vector_store %arg6[%c0_10, %c0_11], %11 {strides = array<i32>} : memref<2x4xf32, #tpu.memory_space<vmem>>, vector<2x4xf32>,
    } else {
    }
    %c0 = arith.constant 0 : index
    %c0_1 = arith.constant 0 : index
    %c0_2 = arith.constant 0 : index
    %3 = vector.load %arg2[%c0, %c0_1, %c0_2] : memref<2x4x256xf32, #tpu.memory_space<vmem>>, vector<2x4x256xf32>
    %c0_3 = arith.constant 0 : index
    %c0_4 = arith.constant 0 : index
    %4 = vector.load %arg6[%c0_3, %c0_4] : memref<2x4xf32, #tpu.memory_space<vmem>>, vector<2x4xf32>
    %cst = arith.constant dense<0.000000e+00> : vector<2x4xf32>
    %5 = vector.multi_reduction <add>, %3, %cst [2] : vector<2x4x256xf32> to vector<2x4xf32>
    %6 = arith.addf %4, %5 : vector<2x4xf32>
    %c0_5 = arith.constant 0 : index
    %c0_6 = arith.constant 0 : index
    %7 = vector.load %arg6[%c0_5, %c0_6] : memref<2x4xf32, #tpu.memory_space<vmem>>, vector<2x4xf32>
    tpu.vector_store %arg6[%c0_5, %c0_6], %6 {strides = array<i32>} : memref<2x4xf32, #tpu.memory_space<vmem>>, vector<2x4xf32>,
    %c0_i32_7 = arith.constant 0 : i32
    %8 = arith.cmpi eq, %arg1, %c0_i32_7 : i32
    %9 = arith.extui %8 : i1 to i32
    %c0_i32_8 = arith.constant 0 : i32
    %10 = arith.cmpi ne, %9, %c0_i32_8 : i32
    scf.if %10 {
      %c0_9 = arith.constant 0 : index
      %c0_10 = arith.constant 0 : index
      %11 = vector.load %arg6[%c0_9, %c0_10] : memref<2x4xf32, #tpu.memory_space<vmem>>, vector<2x4xf32>
      %c0_11 = arith.constant 0 : index
      %c0_12 = arith.constant 0 : index
      %12 = vector.load %arg3[%c0_11, %c0_12] : memref<4x8xf32, #tpu.memory_space<vmem>>, vector<4x8xf32>
      %cst_13 = arith.constant dense<0.000000e+00> : vector<2x8xf32>
      %13 = tpu.matmul %11, %12, %cst_13 {dimension_numbers = #tpu.dot_dimension_numbers<[1], [0], [0], [1], [0, 0, 1, 1], [], []>} : vector<2x4xf32>, vector<4x8xf32>, vector<2x8xf32> -> vector<2x8xf32>
      %c0_14 = arith.constant 0 : index
      %c0_15 = arith.constant 0 : index
      %14 = vector.load %arg4[%c0_14, %c0_15] : memref<1x8xf32, #tpu.memory_space<vmem>>, vector<1x8xf32>
      %15 = vector.broadcast %14 : vector<1x8xf32> to vector<2x8xf32>
      %16 = arith.addf %13, %15 : vector<2x8xf32>
      %c0_16 = arith.constant 0 : index
      %c0_17 = arith.constant 0 : index
      %17 = vector.load %arg5[%c0_16, %c0_17] : memref<2x8xf32, #tpu.memory_space<vmem>>, vector<2x8xf32>
      tpu.vector_store %arg5[%c0_16, %c0_17], %16 {strides = array<i32>} : memref<2x8xf32, #tpu.memory_space<vmem>>, vector<2x8xf32>,
    } else {
    }
    return
  }
  func.func @transform_0(%arg0: i32, %arg1: i32) -> (i32, i32, i32) {
    %c0_i32 = arith.constant 0 : i32
    %c0_i32_0 = arith.constant 0 : i32
    return %arg0, %c0_i32, %arg1 : i32, i32, i32
  }
  func.func @transform_1(%arg0: i32, %arg1: i32) -> (i32, i32) {
    %c0_i32 = arith.constant 0 : i32
    %c0_i32_0 = arith.constant 0 : i32
    %c0_i32_1 = arith.constant 0 : i32
    return %c0_i32, %c0_i32_0 : i32, i32
  }
  func.func @transform_2(%arg0: i32, %arg1: i32) -> (i32, i32) {
    %c0_i32 = arith.constant 0 : i32
    %c0_i32_0 = arith.constant 0 : i32
    %c0_i32_1 = arith.constant 0 : i32
    return %c0_i32, %c0_i32_0 : i32, i32
  }
  func.func @transform_3(%arg0: i32, %arg1: i32) -> (i32, i32) {
    %c0_i32 = arith.constant 0 : i32
    %c0_i32_0 = arith.constant 0 : i32
    return %arg0, %c0_i32 : i32, i32
  }
}

</mosaic_0001>

<llo_original>
// kernel: tpu_custom_call.1
$region0: #{tpu_custom_call.1}
  #allocation0 [shape = 'u32[]', space=smem, size = 0x4, offset = 0x4, fixed_abs, tag = 'smem constant byte address 0x4 - core index']
  #allocation1 [shape = 'u32[144,128]{1,0:T(1,128)}', space=vmem, size = 0x12000, scoped, tag = 'internal scratch']
  #allocation2 [shape = 'f32[2,4]{1,0:T(2,128)}', space=vmem, size = 0x400, scoped, tag = 'scratch operand']
  %s0 = inlined_call_operand.hbm [shape: f32[2,4,256], index: 0, kind: input, shape index: {}]
  %s1 = inlined_call_operand.hbm [shape: f32[4,8], index: 1, kind: input, shape index: {}]
  %s2 = inlined_call_operand.vmem [shape: f32[1,8], index: 2, kind: input, shape index: {}]
  %s3 = inlined_call_operand.hbm [shape: f32[2,8], index: 3, kind: output, shape index: {}]
  %s4 = sld [smem:[#allocation0]]
  $region38: #{tpu_custom_call.1} parent=0
    _
  %s6 = ssub.s32 1, %s4
  %s7 = scalar_select 0, %s6, %s4
  $region1: #{tpu_custom_call.1} parent=0
    #allocation3 [shape = 'u8[8192]{0}', space=vmem, size = 0x2000, scoped, tag = 'input window, operand 0, single buffered']
    #allocation4 [shape = 's32[1]{0}', space=sflag, size = 0x4, scoped, tag = 'scoped memory for tpu_custom_call.1']
    #allocation5 [shape = 's32[1]{0}', space=sflag, size = 0x4, scoped, tag = 'scoped memory for tpu_custom_call.1']
    #allocation6 [shape = 'u8[2048]{0}', space=vmem, size = 0x800, scoped, tag = 'input window, operand 1, single buffered']
    #allocation7 [shape = 's32[1]{0}', space=sflag, size = 0x4, scoped, tag = 'scoped memory for tpu_custom_call.1']
    #allocation8 [shape = 'u8[1024]{0}', space=vmem, size = 0x400, scoped, tag = 'output window, operand 0, single buffered']
    %8 = vsyncpa [#allocation4], 0
    %9 = vsyncpa [#allocation7], 0
    %10 = vsyncpa [#allocation5], 0
    // Predicated region
    $region2: #{tpu_custom_call.1} parent=1 // pred_check
      _
    $region3: #{tpu_custom_call.1} parent=1 // pred_check_branch
      %12 = sbr.rel (0) target = $region5
    $region4: #{tpu_custom_call.1} parent=1 // pred_region
      %s14 = ssub.s32 256, 256
      %15 = vsyncadd [#allocation4], %s14
      %s16 = sshll.u32 [#allocation3], 4
      %s17 = int_to_ptr.vmem [resolvable:$true] %s16
      %22 = dma.hbm_to_vmem [thread:$0]  %s0, 256, %s17, [#allocation4], 128, 128, 8
    $region5: #{tpu_custom_call.1} parent=1 // pred_fallthru
      _
    // Predicated region
    $region6: #{tpu_custom_call.1} parent=1 // pred_check
      _
    $region7: #{tpu_custom_call.1} parent=1 // pred_check_branch
      %24 = sbr.rel (0) target = $region9
    $region8: #{tpu_custom_call.1} parent=1 // pred_region
      %s26 = ssub.s32 64, 64
      %27 = vsyncadd [#allocation7], %s26
      %s29 = sshll.u32 [#allocation6], 4
      %s30 = int_to_ptr.vmem [resolvable:$true] %s29
      %32 = dma.hbm_to_vmem [thread:$0]  %s1, 64, %s30, [#allocation7]
    $region9: #{tpu_custom_call.1} parent=1 // pred_fallthru
      _
    // Predicated region
    $region10: #{tpu_custom_call.1} parent=1 // pred_check
      _
    $region11: #{tpu_custom_call.1} parent=1 // pred_check_branch
      %34 = sbr.rel (0) target = $region13
    $region12: #{tpu_custom_call.1} parent=1 // pred_region
      _
    $region13: #{tpu_custom_call.1} parent=1 // pred_fallthru
      _
    // Predicated region
    $region14: #{tpu_custom_call.1} parent=1 // pred_check
      _
    $region15: #{tpu_custom_call.1} parent=1 // pred_check_branch
      %36 = sbr.rel (0) target = $region17
    $region16: #{tpu_custom_call.1} parent=1 // pred_region
      %37 = dma.done [#allocation4], 256
    $region17: #{tpu_custom_call.1} parent=1 // pred_fallthru
      _
    // Predicated region
    $region18: #{tpu_custom_call.1} parent=1 // pred_check
      _
    $region19: #{tpu_custom_call.1} parent=1 // pred_check_branch
      %39 = sbr.rel (0) target = $region21
    $region20: #{tpu_custom_call.1} parent=1 // pred_region
      %40 = dma.done [#allocation7], 64
    $region21: #{tpu_custom_call.1} parent=1 // pred_fallthru
      _
    %p41 = scmp.eq.s32.totalorder 0, 0
    // Predicated region
    $region22: #{tpu_custom_call.1} parent=1 // pred_check
      %p42 = pneg %p41
    $region23: #{tpu_custom_call.1} parent=1 // pred_check_branch
      %44 = sbr.rel (%p42) target = $region25
    $region24: #{tpu_custom_call.1} parent=1 // pred_region
      %vm45 = vcmask 25600
      %46 = vst.msk [vmem:[#allocation2] sm:$0x3] %vm45, 0.0
    $region25: #{tpu_custom_call.1} parent=1 // pred_fallthru
      _
    %v47 = vld [vmem:[#allocation3] sm:$0xff]
    %v48 = vld [vmem:[#allocation3 + $0x8] sm:$0xff]
    %v49 = vld [vmem:[#allocation2] sm:$0x3]
    %v52 = vcombine.high %v47, %v47
    %v53 = vcombine.high %v48, %v48
    %vm56 = vcmask 1043456
    %v57 = vsel %vm56, %v47, 0.0
    %v58 = vsel %vm56, %v52, 0.0
    %v59 = vadd.f32 %v57, %v58
    %60 = vadd.xlane.f32.xlu0 %v59
    %v61 = vpop.xlane.xlu0 %60
    %v62 = vsel %vm56, %v48, 0.0
    %v63 = vsel %vm56, %v53, 0.0
    %v64 = vadd.f32 %v62, %v63
    %65 = vadd.xlane.f32.xlu0 %v64
    %v66 = vpop.xlane.xlu0 %65
    %v69 = vlaneseq
    %v70 = vand.u32 %v69, 127
    %v71 = vlaneseq
    %v72 = vshrl.u32 %v71, 7
    %v73 = vsub.s32 %v70, %v72
    %v74 = vrot.slane %v61, %v73
    %v75 = vlaneseq
    %v76 = vshrl.u32 %v75, 7
    %v77 = vsub.s32 %v70, %v76
    %v78 = vrot.slane %v66, %v77
    %vm79 = vcmask 1041409
    %v80 = vsel %vm79, %v78, %v74
    %v82 = vadd.f32 %v49, %v80
    %vm83 = vcmask 25600
    %84 = vst.msk [vmem:[#allocation2] sm:$0x3] %vm83, %v82
    // Predicated region
    $region26: #{tpu_custom_call.1} parent=1 // pred_check
      %p85 = pneg %p41
    $region27: #{tpu_custom_call.1} parent=1 // pred_check_branch
      %87 = sbr.rel (%p85) target = $region29
    $region28: #{tpu_custom_call.1} parent=1 // pred_region
      %v88 = vld [vmem:[#allocation2] sm:$0x3]
      %v89 = vld [vmem:[#allocation6] sm:$0xf]
      %v90 = vld [vmem:[%s2] sm:$0x1]
      %v92 = vlaneseq
      %v93 = vshrl.u32 %v92, 7
      %v94 = vsub.s32 0, %v93
      %v95 = vrot.slane %v90, %v94
      %vm97 = vcmask 31744
      %v99 = vsel %vm97, %v88, 0
      %v102 = vsel %vm56, %v89, 0
      %104 = vmatprep.subr.mxu0 0.0
      %105 = vmatpush1.msra.mxu0 %v102
      %106 = vmatprep.subr.mxu0 0.0
      %107 = vmatpush1.msra.mxu0 0.0
      %108 = vmatprep.subr.mxu0 0.0
      %109 = vmatpush1.msra.mxu0 0.0
      %110 = vmatprep.subr.mxu0 0.0
      %111 = vmatpush1.msra.mxu0 0.0
      %112 = vmatprep.subr.mxu0 0.0
      %113 = vmatpush1.msra.mxu0 0.0
      %114 = vmatprep.subr.mxu0 0.0
      %115 = vmatpush1.msra.mxu0 0.0
      %116 = vmatprep.subr.mxu0 0.0
      %117 = vmatpush1.msra.mxu0 0.0
      %118 = vmatprep.subr.mxu0 0.0
      %119 = vmatpush1.msra.mxu0 0.0
      %120 = vmatprep.subr.mxu0 0.0
      %121 = vmatpush1.msra.mxu0 0.0
      %122 = vmatprep.subr.mxu0 0.0
      %123 = vmatpush1.msra.mxu0 0.0
      %124 = vmatprep.subr.mxu0 0.0
      %125 = vmatpush1.msra.mxu0 0.0
      %126 = vmatprep.subr.mxu0 0.0
      %127 = vmatpush1.msra.mxu0 0.0
      %128 = vmatprep.subr.mxu0 0.0
      %129 = vmatpush1.msra.mxu0 0.0
      %130 = vmatprep.subr.mxu0 0.0
      %131 = vmatpush1.msra.mxu0 0.0
      %132 = vmatprep.subr.mxu0 0.0
      %133 = vmatpush1.msra.mxu0 0.0
      %134 = vmatprep.subr.mxu0 0.0
      %135 = vmatpush1.msra.mxu0 0.0
      %136 = vmatprep.subr.mxu0 0.0
      %137 = vmatpush1.msra.mxu0 0.0
      %138 = vmatprep.subr.mxu0 0.0
      %139 = vmatpush1.msra.mxu0 0.0
      %140 = vmatprep.subr.mxu0 0.0
      %141 = vmatpush1.msra.mxu0 0.0
      %142 = vmatprep.subr.mxu0 0.0
      %143 = vmatpush1.msra.mxu0 0.0
      %144 = vmatprep.subr.mxu0 0.0
      %145 = vmatpush1.msra.mxu0 0.0
      %146 = vmatprep.subr.mxu0 0.0
      %147 = vmatpush1.msra.mxu0 0.0
      %148 = vmatprep.subr.mxu0 0.0
      %149 = vmatpush1.msra.mxu0 0.0
      %150 = vmatprep.subr.mxu0 0.0
      %151 = vmatpush1.msra.mxu0 0.0
      %152 = vmatprep.subr.mxu0 0.0
      %153 = vmatpush1.msra.mxu0 0.0
      %154 = vmatprep.subr.mxu0 0.0
      %155 = vmatpush1.msra.mxu0 0.0
      %156 = vmatprep.subr.mxu0 0.0
      %157 = vmatpush1.msra.mxu0 0.0
      %158 = vmatprep.subr.mxu0 0.0
      %159 = vmatpush1.msra.mxu0 0.0
      %160 = vmatprep.subr.mxu0 0.0
      %161 = vmatpush1.msra.mxu0 0.0
      %162 = vmatprep.subr.mxu0 0.0
      %163 = vmatpush1.msra.mxu0 0.0
      %164 = vmatprep.subr.mxu0 0.0
      %165 = vmatpush1.msra.mxu0 0.0
      %166 = vmatprep.subr.mxu0 0.0
      %167 = vmatpush1.msra.mxu0 0.0
      %168 = vmatprep.mubr.f32.mxu0 0.0
      %169 = vmatmul.mubr.f32.gmra.mrb[0].mxu0 %v99
      %v170 = vpop.f32.mrb[0].mxu0
      %v171 = vadd.f32 %v95, %v170
      %v172 = vpop.f32.mrb[0].mxu0
      %173 = vdwg.mxu0
      %vm174 = vcmask 58368
      %175 = vst.msk [vmem:[#allocation8] sm:$0x3] %vm174, %v171
    $region29: #{tpu_custom_call.1} parent=1 // pred_fallthru
      _
    // Predicated region
    $region30: #{tpu_custom_call.1} parent=1 // pred_check
      _
    $region31: #{tpu_custom_call.1} parent=1 // pred_check_branch
      %177 = sbr.rel (0) target = $region33
    $region32: #{tpu_custom_call.1} parent=1 // pred_region
      %s179 = ssub.s32 32, 32
      %180 = vsyncadd [#allocation5], %s179
      %s182 = sshll.u32 [#allocation8], 4
      %s183 = int_to_ptr.vmem [resolvable:$true] %s182
      %185 = dma.vmem_to_hbm [thread:$0]  %s183, 32, %s3, [#allocation5]
    $region33: #{tpu_custom_call.1} parent=1 // pred_fallthru
      _
    // Predicated region
    $region34: #{tpu_custom_call.1} parent=1 // pred_check
      _
    $region35: #{tpu_custom_call.1} parent=1 // pred_check_branch
      %187 = sbr.rel (0) target = $region37
    $region36: #{tpu_custom_call.1} parent=1 // pred_region
      %188 = dma.done [#allocation5], 32
    $region37: #{tpu_custom_call.1} parent=1 // pred_fallthru
      _
    %189 = vsyncpa [#allocation4], 1
    %190 = vsyncpa [#allocation7], 1
    %191 = vsyncpa [#allocation5], 1

</llo_original>
